<compile_context>
chip_gen: v7x
topology: tpu7x:2x2x1
jax: 0.10.0
libtpu: 0.0.40
codegen_flags: <defaults>
</compile_context>

<pallas_src>
import functools

import numpy as np
import jax
import jax.numpy as jnp
from jax import lax
from jax.experimental import pallas as pl
from jax.experimental.pallas import tpu as pltpu

_MIB = 1024 * 1024


# ----------------------------------------------------------------------------
# Kernel 1: vertex filtration (row-tiled)
#   d2[i, j] = ||x_i - x_j||^2  for a (TM, N) row block   (MXU Gram product)
#   v_val[i] = 1 - sum over the k-1 nearest non-self squared dists of exp(-sqrt(.)) / k
# ----------------------------------------------------------------------------
def _vertex_filt_kernel(xr_ref, xa_ref, colsq_ref, v_ref, *, nn_k, n_valid):
    xr = xr_ref[...]                                                   # [TM, D]
    xa = xa_ref[...]                                                   # [N,  D] (padded)
    tm = xr.shape[0]
    n = xa.shape[0]

    # Cross block of the Gram matrix on the MXU (contract the feature axis of both).
    # Kept f32: a bf16 cast would speed up the MXU but worsens r + c - 2g cancellation.
    g = lax.dot_general(xr, xa, (((1,), (1,)), ((), ())),
                        preferred_element_type=jnp.float32)            # [TM, N]
    row_sq = jnp.sum(xr * xr, axis=1, keepdims=True)                   # [TM, 1]
    d2 = jnp.maximum(row_sq + colsq_ref[...] - 2.0 * g, 0.0)           # [TM, N]

    # Mask the self column and any padded columns up front.  Neither iota stays live
    # inside the k-NN loop below.
    row0 = pl.program_id(0) * tm
    ci = lax.broadcasted_iota(jnp.int32, (tm, n), 1)
    ri = lax.broadcasted_iota(jnp.int32, (tm, n), 0) + row0
    inf = jnp.float32(jnp.inf)
    invalid = ci == ri
    if n_valid < n:
        invalid = jnp.logical_or(invalid, ci >= n_valid)
    work = jnp.where(invalid, inf, d2)

    # k-NN density sum.  Per iteration: one min reduce, one equality pass, one
    # tie-count reduce, one mask pass (no argmin sweep).  Ties are consumed with
    # multiplicity, so values match torch.topk(k)[:, 1:] exactly, duplicates included.
    acc = jnp.zeros((tm, 1), jnp.float32)
    remaining = jnp.full((tm, 1), jnp.float32(nn_k - 1))
    for _ in range(nn_k - 1):
        m2 = jnp.min(work, axis=1, keepdims=True)                      # [TM, 1]
        eq = work == m2
        cnt = jnp.sum(jnp.where(eq, 1.0, 0.0), axis=1, keepdims=True)  # tie multiplicity
        take = jnp.minimum(cnt, remaining)
        acc = acc + take * jnp.exp(-jnp.sqrt(m2))                      # sqrt/exp on [TM,1]
        remaining = remaining - take
        work = jnp.where(eq, inf, work)

    v_ref[...] = 1.0 - acc / jnp.float32(nn_k)                         # [TM, 1]


def _vmem_estimate_bytes(tm, n_pad, d):
    # ~5 live [TM, N] f32/bool temporaries (gram, d2/work, compare, iota, select temp)
    # + single-buffered resident x and col_sq + double-buffered (TM, D) stream + output.
    return 4 * (5 * tm * n_pad + n_pad * d + n_pad + 2 * tm * d + 2 * tm)


def _choose_row_tile(n, d, row_tile=None):
    try:
        vmem_cap = int(pltpu.get_tpu_info().vmem_capacity_bytes)
    except Exception:  # pragma: no cover - safety fallback
        vmem_cap = 64 * _MIB                      # conservative (v7x-sized) fallback
    if vmem_cap >= 128 * _MIB:                    # v5e / v6e
        budget, max_tile = 96 * _MIB, 512
    else:                                         # v7x: 64 MiB physical, keep headroom
        budget, max_tile = 48 * _MIB, 128

    if row_tile is None:
        # Prefer >= 2 grid steps so both v7x TensorCores get work under "parallel".
        half = max(8, (((n + 1) // 2 + 7) // 8) * 8)
        tm = max(8, min(max_tile, half))
        tm = (tm // 8) * 8
        while tm > 8 and _vmem_estimate_bytes(tm, ((n + tm - 1) // tm) * tm, d) > budget:
            tm -= 8
    else:
        tm = int(row_tile)
        assert tm % 8 == 0, "row_tile must be a multiple of 8"

    n_pad = ((n + tm - 1) // tm) * tm
    est = _vmem_estimate_bytes(tm, n_pad, d)
    limit = None
    if est > 16 * _MIB:                           # only raise above the smallest default
        limit = int(min(budget, max(32 * _MIB, est + 4 * _MIB)))
    return tm, n_pad, limit


def vertex_filtration(x, nn_k, row_tile=None):
    n, d = x.shape
    x = x.astype(jnp.float32)
    tm, n_pad, limit = _choose_row_tile(n, d, row_tile)

    x_pad = x if n_pad == n else jnp.pad(x, ((0, n_pad - n), (0, 0)))
    # Hoisted, grid-invariant column squared norms ([1, N], resident, single-buffered).
    col_sq = jnp.sum(x_pad * x_pad, axis=1)[None, :]

    params = dict(dimension_semantics=("parallel",))
    if limit is not None:
        params["vmem_limit_bytes"] = limit

    kern = functools.partial(_vertex_filt_kernel, nn_k=nn_k, n_valid=n)
    v_val = pl.pallas_call(
        kern,
        out_shape=jax.ShapeDtypeStruct((n_pad, 1), jnp.float32),
        grid=(n_pad // tm,),
        in_specs=[pl.BlockSpec((tm, d), lambda i: (i, 0)),      # row block of x
                  pl.BlockSpec((n_pad, d), lambda i: (0, 0)),   # full x, resident
                  pl.BlockSpec((1, n_pad), lambda i: (0, 0))],  # col norms, resident
        out_specs=pl.BlockSpec((tm, 1), lambda i: (i, 0)),
        compiler_params=pltpu.CompilerParams(**params),
    )(x_pad, x_pad, col_sq)
    return v_val[:n]


# ----------------------------------------------------------------------------
# Kernel 2: edge filtration (row-tiled over E)
#   e_val[:, 0] = max(v_val[e0], v_val[e1])
#   e_val[:, 1] = 1 - exp(-||x[e0] - x[e1]||)
# ----------------------------------------------------------------------------
def _edge_filt_kernel(xe0_ref, xe1_ref, dv0_ref, dv1_ref, e_ref):
    diff = xe0_ref[...] - xe1_ref[...]                                 # [TE, D]
    nrm = jnp.sqrt(jnp.sum(diff * diff, axis=1, keepdims=True))        # [TE, 1]
    col0 = jnp.maximum(dv0_ref[...], dv1_ref[...])                     # [TE, 1]
    col1 = 1.0 - jnp.exp(-nrm)                                         # [TE, 1]
    # Width-2 store is a masked partial store; acceptable, kernel 2 is trivial/DMA-bound.
    e_ref[...] = jnp.concatenate([col0, col1], axis=1)


def edge_filtration(xe0, xe1, dv0, dv1, max_edge_tile=512):
    e, d = xe0.shape
    # >= 2 grid steps when possible (v7x megacore), tile a multiple of 8, pad E.
    te = max(8, min(max_edge_tile, (((e + 1) // 2 + 7) // 8) * 8))
    e_pad = ((e + te - 1) // te) * te
    pad = e_pad - e
    if pad:
        xe0 = jnp.pad(xe0, ((0, pad), (0, 0)))
        xe1 = jnp.pad(xe1, ((0, pad), (0, 0)))
        dv0 = jnp.pad(dv0, ((0, pad), (0, 0)))
        dv1 = jnp.pad(dv1, ((0, pad), (0, 0)))

    out = pl.pallas_call(
        _edge_filt_kernel,
        out_shape=jax.ShapeDtypeStruct((e_pad, 2), jnp.float32),
        grid=(e_pad // te,),
        in_specs=[pl.BlockSpec((te, d), lambda i: (i, 0)),
                  pl.BlockSpec((te, d), lambda i: (i, 0)),
                  pl.BlockSpec((te, 1), lambda i: (i, 0)),
                  pl.BlockSpec((te, 1), lambda i: (i, 0))],
        out_specs=pl.BlockSpec((te, 2), lambda i: (i, 0)),
        compiler_params=pltpu.CompilerParams(dimension_semantics=("parallel",)),
    )(xe0, xe1, dv0, dv1)
    return out[:e]


# ----------------------------------------------------------------------------
# Glue: edge preprocessing, simplices, sample grid (combinatorial, host side)
# ----------------------------------------------------------------------------
def pre_process_edges_np(edge_index):
    e = np.asarray(edge_index).T            # [num_e, 2]
    e = np.sort(e, axis=1)                  # sort endpoints per edge
    e = np.unique(e, axis=0)                # de-duplicate (deterministic order)
    return e.astype(np.int32)


def get_simplices(num_vertices, edges_np):
    simp = [[i] for i in range(num_vertices)]
    for e in edges_np:
        simp.append(sorted([int(e[0]), int(e[1])]))
    return simp


def sample_grid(res, step):
    pts = []
    num_division = int(1.0 / res)
    for j in range(0, num_division, step):
        for i in range(0, num_division, step):
            pts.append((i, j))
    return pts


# ----------------------------------------------------------------------------
# Forward of MultiPersLandscapeValLayer (up to the GRIL landscape solver)
# ----------------------------------------------------------------------------
def multipers_landscape_forward(x, edge_index, *, nn_k=6, res=0.01, step=10,
                                hom_rank=1, l=2, row_tile=None):
    del hom_rank, l  # only used by the external GRIL solver
    n = x.shape[0]
    k = min(nn_k, n)

    edges_np = pre_process_edges_np(edge_index)          # [E, 2] int32
    edges = jnp.asarray(edges_np)

    # Pallas kernel 1: vertex filtration values (row-tiled, no [N,N] writeback).
    v_val = vertex_filtration(x, k, row_tile=row_tile)   # [N, 1]

    # Gathers (glue).
    xe0 = jnp.take(x, edges[:, 0], axis=0)
    xe1 = jnp.take(x, edges[:, 1], axis=0)
    dv0 = jnp.take(v_val, edges[:, 0], axis=0)
    dv1 = jnp.take(v_val, edges[:, 1], axis=0)

    # Pallas kernel 2: edge filtration values.
    e_val = edge_filtration(xe0, xe1, dv0, dv1)          # [E, 2]

    f_v = jnp.concatenate([v_val, jnp.zeros_like(v_val)], axis=1)   # [N, 2]
    filt = jnp.concatenate([f_v, e_val], axis=0)                    # [N + E, 2]

    simplices = get_simplices(n, edges_np)
    pts = sample_grid(res, step)

    # TODO(synk): mpl.compute_landscape(pts, [(filt, simplices)]) is an external
    # C++ multiparameter persistence (GRIL) computation with no Pallas equivalent.
    return filt, simplices, pts


# ----------------------------------------------------------------------------
# Demo
# ----------------------------------------------------------------------------
if __name__ == "__main__":
    key = jax.random.PRNGKey(0)
    N, D = 16, 4
    x = jax.random.normal(key, (N, D), dtype=jnp.float32)

    # Deterministic undirected graph (ring + chords), stored as a directed
    # edge_index [2, num_directed_edges] like a torch_geometric graph.
    src, dst = [], []
    for i in range(N):                       # ring
        src += [i, (i + 1) % N]
        dst += [(i + 1) % N, i]
    for (a, b) in [(0, 8), (2, 10), (4, 12), (6, 14),
                   (1, 5), (3, 7), (9, 13), (11, 15)]:   # chords
        src += [a, b]
        dst += [b, a]
    edge_index = np.stack([np.array(src), np.array(dst)], axis=0)   # [2, 48]

    # Auto tile selection -> row tile 8, grid=(2,); edge kernel pads E=24 -> 32, grid=(2,).
    filt, simplices, pts = multipers_landscape_forward(
        x, edge_index, nn_k=6, res=0.01, step=10, hom_rank=1, l=2)
    filt = jax.block_until_ready(filt)

    filt_np = np.asarray(filt)
    num_edges = len(simplices) - N
    assert filt_np.shape == (N + num_edges, 2)
    assert np.all(np.isfinite(filt_np))
    # Vertex rows: column 1 must be exactly zero; values in (0, 1].
    assert np.all(filt_np[:N, 1] == 0.0)
    assert np.all((filt_np[:N, 0] > 0.0) & (filt_np[:N, 0] <= 1.0))
    # Edge rows: both columns in [0, 1); column 0 >= the max of its vertex values.
    assert np.all((filt_np[N:, :] >= 0.0) & (filt_np[N:, :] < 1.0))
    print("KERNEL_OK")
</pallas_src>

<mosaic_0001>
module attributes {stable_mosaic.version = 11 : i64} {
  func.func @_vertex_filt_kernel(%arg0: i32, %arg1: memref<8x4xf32, #tpu.memory_space<vmem>>, %arg2: memref<16x4xf32, #tpu.memory_space<vmem>>, %arg3: memref<1x16xf32, #tpu.memory_space<vmem>>, %arg4: memref<8x1xf32, #tpu.memory_space<vmem>>) attributes {dimension_semantics = [#tpu.dimension_semantics<parallel>], iteration_bounds = array<i64: 2>, scalar_prefetch = 0 : i64, scratch_operands = 0 : i64, tpu.core_type = #tpu.core_type<tc>, window_params = [{transform_indices = @transform_0, window_bounds = array<i64: 8, 4>}, {pipeline_mode = #tpu.pipeline_mode<synchronous>, transform_indices = @transform_1, window_bounds = array<i64: 16, 4>}, {pipeline_mode = #tpu.pipeline_mode<synchronous>, transform_indices = @transform_2, window_bounds = array<i64: 1, 16>}, {transform_indices = @transform_3, window_bounds = array<i64: 8, 1>}]} {
    %c0 = arith.constant 0 : index
    %c0_0 = arith.constant 0 : index
    %0 = vector.load %arg1[%c0, %c0_0] : memref<8x4xf32, #tpu.memory_space<vmem>>, vector<8x4xf32>
    %c0_1 = arith.constant 0 : index
    %c0_2 = arith.constant 0 : index
    %1 = vector.load %arg2[%c0_1, %c0_2] : memref<16x4xf32, #tpu.memory_space<vmem>>, vector<16x4xf32>
    %cst = arith.constant dense<0.000000e+00> : vector<8x16xf32>
    %2 = tpu.matmul %0, %1, %cst {dimension_numbers = #tpu.dot_dimension_numbers<[1], [1], [0], [0], [0, 0, 1, 0], [], []>} : vector<8x4xf32>, vector<16x4xf32>, vector<8x16xf32> -> vector<8x16xf32>
    %3 = arith.mulf %0, %0 : vector<8x4xf32>
    %cst_3 = arith.constant dense<0.000000e+00> : vector<8xf32>
    %4 = vector.multi_reduction <add>, %3, %cst_3 [1] : vector<8x4xf32> to vector<8xf32>
    %5 = vector.shape_cast %4 : vector<8xf32> to vector<8x1xf32>
    %c0_4 = arith.constant 0 : index
    %c0_5 = arith.constant 0 : index
    %6 = vector.load %arg3[%c0_4, %c0_5] : memref<1x16xf32, #tpu.memory_space<vmem>>, vector<1x16xf32>
    %7 = vector.broadcast %5 : vector<8x1xf32> to vector<8x16xf32>
    %8 = vector.broadcast %6 : vector<1x16xf32> to vector<8x16xf32>
    %9 = arith.addf %7, %8 : vector<8x16xf32>
    %cst_6 = arith.constant 2.000000e+00 : f32
    %10 = vector.broadcast %cst_6 : f32 to vector<8x16xf32>
    %11 = arith.mulf %10, %2 : vector<8x16xf32>
    %12 = arith.subf %9, %11 : vector<8x16xf32>
    %cst_7 = arith.constant 0.000000e+00 : f32
    %13 = vector.broadcast %cst_7 : f32 to vector<8x16xf32>
    %14 = arith.maximumf %12, %13 : vector<8x16xf32>
    %c8_i32 = arith.constant 8 : i32
    %15 = arith.muli %arg0, %c8_i32 : i32
    %16 = tpu.iota {dimensions = array<i32: 1>} : vector<8x16xi32>
    %17 = tpu.iota {dimensions = array<i32: 0>} : vector<8x16xi32>
    %18 = vector.broadcast %15 : i32 to vector<8x16xi32>
    %19 = arith.addi %17, %18 : vector<8x16xi32>
    %20 = arith.cmpi eq, %16, %19 : vector<8x16xi32>
    %cst_8 = arith.constant 0x7F800000 : f32
    %21 = vector.broadcast %cst_8 : f32 to vector<8x16xf32>
    %22 = arith.select %20, %21, %14 : vector<8x16xi1>, vector<8x16xf32>
    %cst_9 = arith.constant 0.000000e+00 : f32
    %23 = vector.broadcast %cst_9 : f32 to vector<8x1xf32>
    %cst_10 = arith.constant 5.000000e+00 : f32
    %24 = vector.broadcast %cst_10 : f32 to vector<8x1xf32>
    %cst_11 = arith.constant dense<0x7F800000> : vector<8xf32>
    %25 = vector.multi_reduction <minimumf>, %22, %cst_11 [1] : vector<8x16xf32> to vector<8xf32>
    %26 = vector.shape_cast %25 : vector<8xf32> to vector<8x1xf32>
    %27 = vector.broadcast %26 : vector<8x1xf32> to vector<8x16xf32>
    %28 = arith.cmpf oeq, %22, %27 : vector<8x16xf32>
    %cst_12 = arith.constant 1.000000e+00 : f32
    %cst_13 = arith.constant 0.000000e+00 : f32
    %29 = vector.broadcast %cst_12 : f32 to vector<8x16xf32>
    %30 = vector.broadcast %cst_13 : f32 to vector<8x16xf32>
    %31 = arith.select %28, %29, %30 : vector<8x16xi1>, vector<8x16xf32>
    %cst_14 = arith.constant dense<0.000000e+00> : vector<8xf32>
    %32 = vector.multi_reduction <add>, %31, %cst_14 [1] : vector<8x16xf32> to vector<8xf32>
    %33 = vector.shape_cast %32 : vector<8xf32> to vector<8x1xf32>
    %34 = arith.minimumf %33, %24 : vector<8x1xf32>
    %35 = math.sqrt %26 : vector<8x1xf32>
    %cst_15 = arith.constant 0.000000e+00 : f32
    %36 = vector.broadcast %cst_15 : f32 to vector<8x1xf32>
    %37 = arith.subf %36, %35 : vector<8x1xf32>
    %38 = math.exp %37 : vector<8x1xf32>
    %39 = arith.mulf %34, %38 : vector<8x1xf32>
    %40 = arith.addf %23, %39 : vector<8x1xf32>
    %41 = arith.subf %24, %34 : vector<8x1xf32>
    %cst_16 = arith.constant 0x7F800000 : f32
    %42 = vector.broadcast %cst_16 : f32 to vector<8x16xf32>
    %43 = arith.select %28, %42, %22 : vector<8x16xi1>, vector<8x16xf32>
    %cst_17 = arith.constant dense<0x7F800000> : vector<8xf32>
    %44 = vector.multi_reduction <minimumf>, %43, %cst_17 [1] : vector<8x16xf32> to vector<8xf32>
    %45 = vector.shape_cast %44 : vector<8xf32> to vector<8x1xf32>
    %46 = vector.broadcast %45 : vector<8x1xf32> to vector<8x16xf32>
    %47 = arith.cmpf oeq, %43, %46 : vector<8x16xf32>
    %cst_18 = arith.constant 1.000000e+00 : f32
    %cst_19 = arith.constant 0.000000e+00 : f32
    %48 = vector.broadcast %cst_18 : f32 to vector<8x16xf32>
    %49 = vector.broadcast %cst_19 : f32 to vector<8x16xf32>
    %50 = arith.select %47, %48, %49 : vector<8x16xi1>, vector<8x16xf32>
    %cst_20 = arith.constant dense<0.000000e+00> : vector<8xf32>
    %51 = vector.multi_reduction <add>, %50, %cst_20 [1] : vector<8x16xf32> to vector<8xf32>
    %52 = vector.shape_cast %51 : vector<8xf32> to vector<8x1xf32>
    %53 = arith.minimumf %52, %41 : vector<8x1xf32>
    %54 = math.sqrt %45 : vector<8x1xf32>
    %cst_21 = arith.constant 0.000000e+00 : f32
    %55 = vector.broadcast %cst_21 : f32 to vector<8x1xf32>
    %56 = arith.subf %55, %54 : vector<8x1xf32>
    %57 = math.exp %56 : vector<8x1xf32>
    %58 = arith.mulf %53, %57 : vector<8x1xf32>
    %59 = arith.addf %40, %58 : vector<8x1xf32>
    %60 = arith.subf %41, %53 : vector<8x1xf32>
    %cst_22 = arith.constant 0x7F800000 : f32
    %61 = vector.broadcast %cst_22 : f32 to vector<8x16xf32>
    %62 = arith.select %47, %61, %43 : vector<8x16xi1>, vector<8x16xf32>
    %cst_23 = arith.constant dense<0x7F800000> : vector<8xf32>
    %63 = vector.multi_reduction <minimumf>, %62, %cst_23 [1] : vector<8x16xf32> to vector<8xf32>
    %64 = vector.shape_cast %63 : vector<8xf32> to vector<8x1xf32>
    %65 = vector.broadcast %64 : vector<8x1xf32> to vector<8x16xf32>
    %66 = arith.cmpf oeq, %62, %65 : vector<8x16xf32>
    %cst_24 = arith.constant 1.000000e+00 : f32
    %cst_25 = arith.constant 0.000000e+00 : f32
    %67 = vector.broadcast %cst_24 : f32 to vector<8x16xf32>
    %68 = vector.broadcast %cst_25 : f32 to vector<8x16xf32>
    %69 = arith.select %66, %67, %68 : vector<8x16xi1>, vector<8x16xf32>
    %cst_26 = arith.constant dense<0.000000e+00> : vector<8xf32>
    %70 = vector.multi_reduction <add>, %69, %cst_26 [1] : vector<8x16xf32> to vector<8xf32>
    %71 = vector.shape_cast %70 : vector<8xf32> to vector<8x1xf32>
    %72 = arith.minimumf %71, %60 : vector<8x1xf32>
    %73 = math.sqrt %64 : vector<8x1xf32>
    %cst_27 = arith.constant 0.000000e+00 : f32
    %74 = vector.broadcast %cst_27 : f32 to vector<8x1xf32>
    %75 = arith.subf %74, %73 : vector<8x1xf32>
    %76 = math.exp %75 : vector<8x1xf32>
    %77 = arith.mulf %72, %76 : vector<8x1xf32>
    %78 = arith.addf %59, %77 : vector<8x1xf32>
    %79 = arith.subf %60, %72 : vector<8x1xf32>
    %cst_28 = arith.constant 0x7F800000 : f32
    %80 = vector.broadcast %cst_28 : f32 to vector<8x16xf32>
    %81 = arith.select %66, %80, %62 : vector<8x16xi1>, vector<8x16xf32>
    %cst_29 = arith.constant dense<0x7F800000> : vector<8xf32>
    %82 = vector.multi_reduction <minimumf>, %81, %cst_29 [1] : vector<8x16xf32> to vector<8xf32>
    %83 = vector.shape_cast %82 : vector<8xf32> to vector<8x1xf32>
    %84 = vector.broadcast %83 : vector<8x1xf32> to vector<8x16xf32>
    %85 = arith.cmpf oeq, %81, %84 : vector<8x16xf32>
    %cst_30 = arith.constant 1.000000e+00 : f32
    %cst_31 = arith.constant 0.000000e+00 : f32
    %86 = vector.broadcast %cst_30 : f32 to vector<8x16xf32>
    %87 = vector.broadcast %cst_31 : f32 to vector<8x16xf32>
    %88 = arith.select %85, %86, %87 : vector<8x16xi1>, vector<8x16xf32>
    %cst_32 = arith.constant dense<0.000000e+00> : vector<8xf32>
    %89 = vector.multi_reduction <add>, %88, %cst_32 [1] : vector<8x16xf32> to vector<8xf32>
    %90 = vector.shape_cast %89 : vector<8xf32> to vector<8x1xf32>
    %91 = arith.minimumf %90, %79 : vector<8x1xf32>
    %92 = math.sqrt %83 : vector<8x1xf32>
    %cst_33 = arith.constant 0.000000e+00 : f32
    %93 = vector.broadcast %cst_33 : f32 to vector<8x1xf32>
    %94 = arith.subf %93, %92 : vector<8x1xf32>
    %95 = math.exp %94 : vector<8x1xf32>
    %96 = arith.mulf %91, %95 : vector<8x1xf32>
    %97 = arith.addf %78, %96 : vector<8x1xf32>
    %98 = arith.subf %79, %91 : vector<8x1xf32>
    %cst_34 = arith.constant 0x7F800000 : f32
    %99 = vector.broadcast %cst_34 : f32 to vector<8x16xf32>
    %100 = arith.select %85, %99, %81 : vector<8x16xi1>, vector<8x16xf32>
    %cst_35 = arith.constant dense<0x7F800000> : vector<8xf32>
    %101 = vector.multi_reduction <minimumf>, %100, %cst_35 [1] : vector<8x16xf32> to vector<8xf32>
    %102 = vector.shape_cast %101 : vector<8xf32> to vector<8x1xf32>
    %103 = vector.broadcast %102 : vector<8x1xf32> to vector<8x16xf32>
    %104 = arith.cmpf oeq, %100, %103 : vector<8x16xf32>
    %cst_36 = arith.constant 1.000000e+00 : f32
    %cst_37 = arith.constant 0.000000e+00 : f32
    %105 = vector.broadcast %cst_36 : f32 to vector<8x16xf32>
    %106 = vector.broadcast %cst_37 : f32 to vector<8x16xf32>
    %107 = arith.select %104, %105, %106 : vector<8x16xi1>, vector<8x16xf32>
    %cst_38 = arith.constant dense<0.000000e+00> : vector<8xf32>
    %108 = vector.multi_reduction <add>, %107, %cst_38 [1] : vector<8x16xf32> to vector<8xf32>
    %109 = vector.shape_cast %108 : vector<8xf32> to vector<8x1xf32>
    %110 = arith.minimumf %109, %98 : vector<8x1xf32>
    %111 = math.sqrt %102 : vector<8x1xf32>
    %cst_39 = arith.constant 0.000000e+00 : f32
    %112 = vector.broadcast %cst_39 : f32 to vector<8x1xf32>
    %113 = arith.subf %112, %111 : vector<8x1xf32>
    %114 = math.exp %113 : vector<8x1xf32>
    %115 = arith.mulf %110, %114 : vector<8x1xf32>
    %116 = arith.addf %97, %115 : vector<8x1xf32>
    %cst_40 = arith.constant 6.000000e+00 : f32
    %117 = vector.broadcast %cst_40 : f32 to vector<8x1xf32>
    %118 = arith.divf %116, %117 : vector<8x1xf32>
    %cst_41 = arith.constant 1.000000e+00 : f32
    %119 = vector.broadcast %cst_41 : f32 to vector<8x1xf32>
    %120 = arith.subf %119, %118 : vector<8x1xf32>
    %c0_42 = arith.constant 0 : index
    %c0_43 = arith.constant 0 : index
    %121 = vector.load %arg4[%c0_42, %c0_43] : memref<8x1xf32, #tpu.memory_space<vmem>>, vector<8x1xf32>
    tpu.vector_store %arg4[%c0_42, %c0_43], %120 {strides = array<i32>} : memref<8x1xf32, #tpu.memory_space<vmem>>, vector<8x1xf32>,
    return
  }
  func.func @transform_0(%arg0: i32) -> (i32, i32) {
    %c0_i32 = arith.constant 0 : i32
    %c0_i32_0 = arith.constant 0 : i32
    return %arg0, %c0_i32 : i32, i32
  }
  func.func @transform_1(%arg0: i32) -> (i32, i32) {
    %c0_i32 = arith.constant 0 : i32
    %c0_i32_0 = arith.constant 0 : i32
    %c0_i32_1 = arith.constant 0 : i32
    return %c0_i32, %c0_i32_0 : i32, i32
  }
  func.func @transform_2(%arg0: i32) -> (i32, i32) {
    %c0_i32 = arith.constant 0 : i32
    %c0_i32_0 = arith.constant 0 : i32
    %c0_i32_1 = arith.constant 0 : i32
    return %c0_i32, %c0_i32_0 : i32, i32
  }
  func.func @transform_3(%arg0: i32) -> (i32, i32) {
    %c0_i32 = arith.constant 0 : i32
    %c0_i32_0 = arith.constant 0 : i32
    return %arg0, %c0_i32 : i32, i32
  }
}

</mosaic_0001>

<llo_original>
// kernel: tpu_custom_call.1
$region0: #{tpu_custom_call.1}
  #allocation0 [shape = 'u32[]', space=smem, size = 0x4, offset = 0x4, fixed_abs, tag = 'smem constant byte address 0x4 - core index']
  #allocation1 [shape = 'u32[144,128]{1,0:T(1,128)}', space=vmem, size = 0x12000, scoped, tag = 'internal scratch']
  %s0 = inlined_call_operand.vmem [shape: f32[16,4], index: 0, kind: input, shape index: {}]
  %s1 = inlined_call_operand.vmem [shape: f32[16,4], index: 1, kind: input, shape index: {}]
  %s2 = inlined_call_operand.vmem [shape: f32[1,16], index: 2, kind: input, shape index: {}]
  %s3 = inlined_call_operand.vmem [shape: f32[16,1], index: 3, kind: output, shape index: {}]
  %s4 = sld [smem:[#allocation0]]
  $region45: #{tpu_custom_call.1} parent=0
    _
  %s6 = ssub.s32 1, %s4
  %s7 = scalar_select 0, %s6, %s4
  loop: start=0, step=1, limit=4
  $region2: #{tpu_custom_call.1} parent=0 // loop_pre_header
    _
  $region3: #{tpu_custom_call.1} parent=0 // loop_header
    %s9 = sphi 0, %s13
    %p10 = scmp.ge.s32.totalorder %s9, 4
    %s19 = sphi 0, %s21
    %s22 = sphi 0, %s19
    %s23 = sphi 0, %s22
    %s39 = sphi 0, %s23
    %s43 = sphi 0, %s43
    %s45 = sphi 0, %s43
    %s46 = sphi 0, %s45
    %s60 = sphi 0, %s46
    %s64 = sphi 0, %s64
    %s66 = sphi 0, %s64
    %s67 = sphi 0, %s66
    %s81 = sphi 0, %s67
    %s87 = sphi 0, %s89
    %s90 = sphi 0, %s87
    %s91 = sphi 0, %s90
    %s107 = sphi 0, %s91
  $region4: #{tpu_custom_call.1} parent=0 // loop_header_branch
    %12 = sbr.rel (%p10) target = $region8
  $region5: #{tpu_custom_call.1} parent=0 // loop_body
    %s14 = ssub.s32 %s9, 1
    %s15 = ssub.s32 %s9, 2
    %s16 = sadd.s32 %s9, 1
    %s17 = ssub.s32 %s9, %s16
    %p18 = scmp.eq.s32.totalorder %s17, 0
    %s20 = sadd.s32 %s19, 1
    %s21 = scalar_select %p18, %s19, %s20
    %p24 = pneg %p18
    %p25 = scmp.eq.s32.totalorder %s9, 1
    %p26 = por %p24, %p25
    %p27 = scmp.ne.s32.totalorder %s19, %s22
    %p28 = scmp.eq.s32.totalorder %s9, 0
    %p29 = por %p27, %p28
    %p30 = scmp.ne.s32.totalorder %s19, %s22
    %p31 = scmp.eq.s32.totalorder %s14, 1
    %p32 = por %p30, %p31
    %p33 = scmp.ne.s32.totalorder %s22, %s23
    %p34 = scmp.eq.s32.totalorder %s14, 0
    %p35 = por %p33, %p34
    %p36 = scmp.ne.s32.totalorder %s22, %s23
    %p37 = scmp.eq.s32.totalorder %s15, 1
    %p38 = por %p36, %p37
    %p40 = scmp.ne.s32.totalorder %s23, %s39
    %p41 = scmp.eq.s32.totalorder %s15, 0
    %p42 = por %p40, %p41
    %s44 = sadd.s32 %s43, 1
    %p47 = scmp.eq.s32.totalorder %s9, 1
    %p48 = scmp.ne.s32.totalorder %s43, %s45
    %p49 = scmp.eq.s32.totalorder %s9, 0
    %p50 = por %p48, %p49
    %p51 = scmp.ne.s32.totalorder %s43, %s45
    %p52 = scmp.eq.s32.totalorder %s14, 1
    %p53 = por %p51, %p52
    %p54 = scmp.ne.s32.totalorder %s45, %s46
    %p55 = scmp.eq.s32.totalorder %s14, 0
    %p56 = por %p54, %p55
    %p57 = scmp.ne.s32.totalorder %s45, %s46
    %p58 = scmp.eq.s32.totalorder %s15, 1
    %p59 = por %p57, %p58
    %p61 = scmp.ne.s32.totalorder %s46, %s60
    %p62 = scmp.eq.s32.totalorder %s15, 0
    %p63 = por %p61, %p62
    %s65 = sadd.s32 %s64, 1
    %p68 = scmp.eq.s32.totalorder %s9, 1
    %p69 = scmp.ne.s32.totalorder %s64, %s66
    %p70 = scmp.eq.s32.totalorder %s9, 0
    %p71 = por %p69, %p70
    %p72 = scmp.ne.s32.totalorder %s64, %s66
    %p73 = scmp.eq.s32.totalorder %s14, 1
    %p74 = por %p72, %p73
    %p75 = scmp.ne.s32.totalorder %s66, %s67
    %p76 = scmp.eq.s32.totalorder %s14, 0
    %p77 = por %p75, %p76
    %p78 = scmp.ne.s32.totalorder %s66, %s67
    %p79 = scmp.eq.s32.totalorder %s15, 1
    %p80 = por %p78, %p79
    %p82 = scmp.ne.s32.totalorder %s67, %s81
    %p83 = scmp.eq.s32.totalorder %s15, 0
    %p84 = por %p82, %p83
    %s85 = ssub.s32 %s9, %s16
    %p86 = scmp.eq.s32.totalorder %s85, 0
    %s88 = sadd.s32 %s87, 1
    %s89 = scalar_select %p86, %s87, %s88
    %p92 = pneg %p86
    %p93 = scmp.eq.s32.totalorder %s9, 1
    %p94 = por %p92, %p93
    %p95 = scmp.ne.s32.totalorder %s87, %s90
    %p96 = scmp.eq.s32.totalorder %s9, 0
    %p97 = por %p95, %p96
    %p98 = scmp.ne.s32.totalorder %s87, %s90
    %p99 = scmp.eq.s32.totalorder %s14, 1
    %p100 = por %p98, %p99
    %p101 = scmp.ne.s32.totalorder %s90, %s91
    %p102 = scmp.eq.s32.totalorder %s14, 0
    %p103 = por %p101, %p102
    %p104 = scmp.ne.s32.totalorder %s90, %s91
    %p105 = scmp.eq.s32.totalorder %s15, 1
    %p106 = por %p104, %p105
    %p108 = scmp.ne.s32.totalorder %s91, %s107
    %p109 = scmp.eq.s32.totalorder %s15, 0
    %p110 = por %p108, %p109
    %p111 = scmp.le.s32.totalorder 1, %s9
    %p112 = scmp.lt.s32.totalorder %s9, 3
    %p113 = pnand %p111, %p112
    %p114 = pneg %p113
    // Predicated region
    $region9: #{tpu_custom_call.1} parent=5 // pred_check
      _
    $region10: #{tpu_custom_call.1} parent=5 // pred_check_branch
      %116 = sbr.rel (%p113) target = $region12
    $region11: #{tpu_custom_call.1} parent=5 // pred_region
      %s117 = ssub.s32 %s9, 1
      // Predicated region
      $region13: #{tpu_custom_call.1} parent=11 // pred_check
        %p118 = pneg %p56
      $region14: #{tpu_custom_call.1} parent=11 // pred_check_branch
        %120 = sbr.rel (%p118) target = $region16
      $region15: #{tpu_custom_call.1} parent=11 // pred_region
        _
      $region16: #{tpu_custom_call.1} parent=11 // pred_fallthru
        _
      // Predicated region
      $region17: #{tpu_custom_call.1} parent=11 // pred_check
        %p121 = pneg %p77
      $region18: #{tpu_custom_call.1} parent=11 // pred_check_branch
        %123 = sbr.rel (%p121) target = $region20
      $region19: #{tpu_custom_call.1} parent=11 // pred_region
        _
      $region20: #{tpu_custom_call.1} parent=11 // pred_fallthru
        _
    $region12: #{tpu_custom_call.1} parent=5 // pred_fallthru
      _
    %p124 = scmp.lt.s32.totalorder %s9, 2
    // Predicated region
    $region21: #{tpu_custom_call.1} parent=5 // pred_check
      %p125 = pneg %p124
    $region22: #{tpu_custom_call.1} parent=5 // pred_check_branch
      %127 = sbr.rel (%p125) target = $region24
    $region23: #{tpu_custom_call.1} parent=5 // pred_region
      // Predicated region
      $region25: #{tpu_custom_call.1} parent=23 // pred_check
        %p128 = pneg %p29
      $region26: #{tpu_custom_call.1} parent=23 // pred_check_branch
        %130 = sbr.rel (%p128) target = $region28
      $region27: #{tpu_custom_call.1} parent=23 // pred_region
        %p131 = scmp.lt.s32.totalorder %s9, 1
        %s132 = scalar_select %p131, %s9, 1
        %s133 = smul.addr %s132, 8
        %s134 = scalar_lea.vmem %s0, %s133
      $region28: #{tpu_custom_call.1} parent=23 // pred_fallthru
        _
    $region24: #{tpu_custom_call.1} parent=5 // pred_fallthru
      _
    %p135 = scmp.le.s32.totalorder 1, %s9
    %p136 = scmp.lt.s32.totalorder %s9, 3
    %p137 = pnand %p135, %p136
    %p138 = pneg %p137
    // Predicated region
    $region29: #{tpu_custom_call.1} parent=5 // pred_check
      _
    $region30: #{tpu_custom_call.1} parent=5 // pred_check_branch
      %140 = sbr.rel (%p137) target = $region32
    $region31: #{tpu_custom_call.1} parent=5 // pred_region
      %s141 = ssub.s32 %s9, 1
      %p142 = scmp.lt.s32.totalorder %s14, 1
      %s143 = scalar_select %p142, %s14, 1
      %s144 = smul.addr %s143, 8
      %s145 = scalar_lea.vmem %s0, %s144
      %p146 = pneg %p35
      %p147 = pneg %p32
      %p148 = pneg %p56
      %p149 = pneg %p53
      %p150 = pneg %p77
      %p151 = pneg %p74
      %p152 = pneg %p103
      %p153 = pneg %p100
      %p154 = scmp.lt.s32.totalorder %s14, 1
      %s155 = scalar_select %p154, %s14, 1
      %s156 = smul.addr %s155, 8
      %s157 = scalar_lea.vmem %s3, %s156
      %p158 = scmp.lt.s32.totalorder %s14, 1
      %s159 = scalar_select %p158, %s14, 1
      %s160 = smul.addr %s159, 8
      %s161 = scalar_lea.vmem %s0, %s160
      %p162 = scmp.lt.s32.totalorder %s14, 1
      %s163 = scalar_select %p162, %s14, 1
      %s164 = smul.addr %s163, 8
      %s165 = scalar_lea.vmem %s3, %s164
      %v166 = vld [vmem:[%s161] sm:$0xff]
      %v167 = vld [vmem:[%s1] sm:$0xff]
      %v168 = vld [vmem:[%s1 + $0x8] sm:$0xff]
      %vm169 = vcmask 31744
      %v171 = vsel %vm169, %v166, 0
      %v174 = vsel %vm169, %v167, 0
      %v177 = vsel %vm169, %v168, 0
      %179 = vmatprep.subr.mxu0 0.0
      %180 = vmatpush1.xpose.msra.mxu0 %v174
      %181 = vmatprep.subr.mxu0 0.0
      %182 = vmatpush1.xpose.msra.mxu0 %v177
      %183 = vmatprep.subr.mxu0 0.0
      %184 = vmatpush1.xpose.msra.mxu0 0.0
      %185 = vmatprep.subr.mxu0 0.0
      %186 = vmatpush1.xpose.msra.mxu0 0.0
      %187 = vmatprep.subr.mxu0 0.0
      %188 = vmatpush1.xpose.msra.mxu0 0.0
      %189 = vmatprep.subr.mxu0 0.0
      %190 = vmatpush1.xpose.msra.mxu0 0.0
      %191 = vmatprep.subr.mxu0 0.0
      %192 = vmatpush1.xpose.msra.mxu0 0.0
      %193 = vmatprep.subr.mxu0 0.0
      %194 = vmatpush1.xpose.msra.mxu0 0.0
      %195 = vmatprep.subr.mxu0 0.0
      %196 = vmatpush1.xpose.msra.mxu0 0.0
      %197 = vmatprep.subr.mxu0 0.0
      %198 = vmatpush1.xpose.msra.mxu0 0.0
      %199 = vmatprep.subr.mxu0 0.0
      %200 = vmatpush1.xpose.msra.mxu0 0.0
      %201 = vmatprep.subr.mxu0 0.0
      %202 = vmatpush1.xpose.msra.mxu0 0.0
      %203 = vmatprep.subr.mxu0 0.0
      %204 = vmatpush1.xpose.msra.mxu0 0.0
      %205 = vmatprep.subr.mxu0 0.0
      %206 = vmatpush1.xpose.msra.mxu0 0.0
      %207 = vmatprep.subr.mxu0 0.0
      %208 = vmatpush1.xpose.msra.mxu0 0.0
      %209 = vmatprep.subr.mxu0 0.0
      %210 = vmatpush1.xpose.msra.mxu0 0.0
      %211 = vmatprep.subr.mxu0 0.0
      %212 = vmatpush1.xpose.msra.mxu0 0.0
      %213 = vmatprep.subr.mxu0 0.0
      %214 = vmatpush1.xpose.msra.mxu0 0.0
      %215 = vmatprep.subr.mxu0 0.0
      %216 = vmatpush1.xpose.msra.mxu0 0.0
      %217 = vmatprep.subr.mxu0 0.0
      %218 = vmatpush1.xpose.msra.mxu0 0.0
      %219 = vmatprep.subr.mxu0 0.0
      %220 = vmatpush1.xpose.msra.mxu0 0.0
      %221 = vmatprep.subr.mxu0 0.0
      %222 = vmatpush1.xpose.msra.mxu0 0.0
      %223 = vmatprep.subr.mxu0 0.0
      %224 = vmatpush1.xpose.msra.mxu0 0.0
      %225 = vmatprep.subr.mxu0 0.0
      %226 = vmatpush1.xpose.msra.mxu0 0.0
      %227 = vmatprep.subr.mxu0 0.0
      %228 = vmatpush1.xpose.msra.mxu0 0.0
      %229 = vmatprep.subr.mxu0 0.0
      %230 = vmatpush1.xpose.msra.mxu0 0.0
      %231 = vmatprep.subr.mxu0 0.0
      %232 = vmatpush1.xpose.msra.mxu0 0.0
      %233 = vmatprep.subr.mxu0 0.0
      %234 = vmatpush1.xpose.msra.mxu0 0.0
      %235 = vmatprep.subr.mxu0 0.0
      %236 = vmatpush1.xpose.msra.mxu0 0.0
      %237 = vmatprep.subr.mxu0 0.0
      %238 = vmatpush1.xpose.msra.mxu0 0.0
      %239 = vmatprep.subr.mxu0 0.0
      %240 = vmatpush1.xpose.msra.mxu0 0.0
      %241 = vmatprep.subr.mxu0 0.0
      %242 = vmatpush1.xpose.msra.mxu0 0.0
      %243 = vmatprep.mubr.f32.mxu0 0.0
      %244 = vmatmul.mubr.f32.gmra.mrb[0].mxu0 %v171
      %v245 = vpop.f32.mrb[0].mxu0
      %v246 = vadd.f32 0.0, %v245
      %v247 = vpop.f32.mrb[0].mxu0
      %248 = vdwg.mxu0
      %v249 = vmul.f32 %v166, %v166
      %v250 = vsel %vm169, %v249, 0.0
      %251 = vadd.xlane.f32.xlu0 %v250
      %v252 = vpop.xlane.xlu0 %251
      %v253 = vld [vmem:[%s2] sm:$0x1]
      %v255 = vlaneseq
      %v256 = vshrl.u32 %v255, 7
      %v257 = vsub.s32 0, %v256
      %v258 = vrot.slane %v253, %v257
      %v260 = vadd.f32 %v252, %v258
      %v261 = vmul.f32 %v246, 2.0
      %v262 = vsub.f32 %v260, %v261
      %v263 = vmax.f32 %v262, 0.0
      %s264 = smul.u32 %s14, 8
      %v265 = vlaneseq
      %v266 = vand.u32 %v265, 127
      %v267 = vlaneseq
      %v268 = vshrl.u32 %v267, 7
      %v269 = vstv %s264
      %v270 = vadd.s32 %v268, %v269
      %vm271 = vcmp.eq.s32.totalorder %v266, %v270
      %v272 = vsel %vm271, inf, %v263
      %vm273 = vcmask 130048
      %v274 = vsel %vm273, %v272, inf
      %275 = vmin.xlane.f32.xlu0 %v274
      %v276 = vpop.xlane.xlu0 %275
      %vm277 = vcmp.eq.f32.partialorder %v272, %v276
      %v278 = vsel %vm277, 1.0, 0.0
      %v279 = vsel %vm273, %v278, 0.0
      %280 = vadd.xlane.f32.xlu0 %v279
      %v281 = vpop.xlane.xlu0 %280
      %v282 = vmin.f32 %v281, 5.0
      %v283 = vrsqrt.pop %v276
      %v284 = vmul.f32 %v276, %v283
      %vm285 = vcmp.eq.f32.partialorder %v276, inf
      %v286 = vsel %vm285, %v276, %v284
      %vm287 = vcmp.eq.f32.partialorder %v276, 0.0
      %v288 = vand.u32 %v276, 2147483648
      %v289 = vsel %vm287, %v288, %v286
      %v290 = vsub.f32 0.0, %v289
      %v291 = vmul.f32 %v290, 1.442695
      %v292 = vpow.pop %v291
      %v293 = vmul.f32 %v282, %v292
      %v294 = vadd.f32 %v293, 0.0
      %v295 = vsub.f32 5.0, %v282
      %v296 = vsel %vm277, inf, %v272
      %v297 = vsel %vm273, %v296, inf
      %298 = vmin.xlane.f32.xlu0 %v297
      %v299 = vpop.xlane.xlu0 %298
      %vm300 = vcmp.eq.f32.partialorder %v296, %v299
      %v301 = vsel %vm300, 1.0, 0.0
      %v302 = vsel %vm273, %v301, 0.0
      %303 = vadd.xlane.f32.xlu0 %v302
      %v304 = vpop.xlane.xlu0 %303
      %v305 = vmin.f32 %v304, %v295
      %v306 = vrsqrt.pop %v299
      %v307 = vmul.f32 %v299, %v306
      %vm308 = vcmp.eq.f32.partialorder %v299, inf
      %v309 = vsel %vm308, %v299, %v307
      %vm310 = vcmp.eq.f32.partialorder %v299, 0.0
      %v311 = vand.u32 %v299, 2147483648
      %v312 = vsel %vm310, %v311, %v309
      %v313 = vsub.f32 0.0, %v312
      %v314 = vmul.f32 %v313, 1.442695
      %v315 = vpow.pop %v314
      %v316 = vmul.f32 %v305, %v315
      %v317 = vadd.f32 %v294, %v316
      %v318 = vsub.f32 %v295, %v305
      %v319 = vsel %vm300, inf, %v296
      %v320 = vsel %vm273, %v319, inf
      %321 = vmin.xlane.f32.xlu0 %v320
      %v322 = vpop.xlane.xlu0 %321
      %vm323 = vcmp.eq.f32.partialorder %v319, %v322
      %v324 = vsel %vm323, 1.0, 0.0
      %v325 = vsel %vm273, %v324, 0.0
      %326 = vadd.xlane.f32.xlu0 %v325
      %v327 = vpop.xlane.xlu0 %326
      %v328 = vmin.f32 %v327, %v318
      %v329 = vrsqrt.pop %v322
      %v330 = vmul.f32 %v322, %v329
      %vm331 = vcmp.eq.f32.partialorder %v322, inf
      %v332 = vsel %vm331, %v322, %v330
      %vm333 = vcmp.eq.f32.partialorder %v322, 0.0
      %v334 = vand.u32 %v322, 2147483648
      %v335 = vsel %vm333, %v334, %v332
      %v336 = vsub.f32 0.0, %v335
      %v337 = vmul.f32 %v336, 1.442695
      %v338 = vpow.pop %v337
      %v339 = vmul.f32 %v328, %v338
      %v340 = vadd.f32 %v317, %v339
      %v341 = vsub.f32 %v318, %v328
      %v342 = vsel %vm323, inf, %v319
      %v343 = vsel %vm273, %v342, inf
      %344 = vmin.xlane.f32.xlu0 %v343
      %v345 = vpop.xlane.xlu0 %344
      %vm346 = vcmp.eq.f32.partialorder %v342, %v345
      %v347 = vsel %vm346, 1.0, 0.0
      %v348 = vsel %vm273, %v347, 0.0
      %349 = vadd.xlane.f32.xlu0 %v348
      %v350 = vpop.xlane.xlu0 %349
      %v351 = vmin.f32 %v350, %v341
      %v352 = vrsqrt.pop %v345
      %v353 = vmul.f32 %v345, %v352
      %vm354 = vcmp.eq.f32.partialorder %v345, inf
      %v355 = vsel %vm354, %v345, %v353
      %vm356 = vcmp.eq.f32.partialorder %v345, 0.0
      %v357 = vand.u32 %v345, 2147483648
      %v358 = vsel %vm356, %v357, %v355
      %v359 = vsub.f32 0.0, %v358
      %v360 = vmul.f32 %v359, 1.442695
      %v361 = vpow.pop %v360
      %v362 = vmul.f32 %v351, %v361
      %v363 = vadd.f32 %v340, %v362
      %v364 = vsub.f32 %v341, %v351
      %v365 = vsel %vm346, inf, %v342
      %v366 = vsel %vm273, %v365, inf
      %367 = vmin.xlane.f32.xlu0 %v366
      %v368 = vpop.xlane.xlu0 %367
      %vm369 = vcmp.eq.f32.partialorder %v365, %v368
      %v370 = vsel %vm369, 1.0, 0.0
      %v371 = vsel %vm273, %v370, 0.0
      %372 = vadd.xlane.f32.xlu0 %v371
      %v373 = vpop.xlane.xlu0 %372
      %v374 = vmin.f32 %v373, %v364
      %v375 = vrsqrt.pop %v368
      %v376 = vmul.f32 %v368, %v375
      %vm377 = vcmp.eq.f32.partialorder %v368, inf
      %v378 = vsel %vm377, %v368, %v376
      %vm379 = vcmp.eq.f32.partialorder %v368, 0.0
      %v380 = vand.u32 %v368, 2147483648
      %v381 = vsel %vm379, %v380, %v378
      %v382 = vsub.f32 0.0, %v381
      %v383 = vmul.f32 %v382, 1.442695
      %v384 = vpow.pop %v383
      %v385 = vmul.f32 %v374, %v384
      %v386 = vadd.f32 %v363, %v385
      %v387 = vrcp.pop 6.0
      %v388 = vmul.f32 %v386, %v387
      %v389 = vsub.f32 1.0, %v388
      %vm390 = vcmask 7168
      %391 = vst.msk [vmem:[%s165] sm:$0xff] %vm390, %v389
      %p392 = scmp.lt.s32.totalorder %s14, 1
      %s393 = scalar_select %p392, %s14, 1
      %s394 = smul.addr %s393, 8
      %s395 = scalar_lea.vmem %s3, %s394
      // Predicated region
      $region33: #{tpu_custom_call.1} parent=31 // pred_check
        %p396 = pneg %p100
      $region34: #{tpu_custom_call.1} parent=31 // pred_check_branch
        %398 = sbr.rel (%p396) target = $region36
      $region35: #{tpu_custom_call.1} parent=31 // pred_region
        _
      $region36: #{tpu_custom_call.1} parent=31 // pred_fallthru
        _
    $region32: #{tpu_custom_call.1} parent=5 // pred_fallthru
      _
    %p399 = scmp.le.s32.totalorder 2, %s9
    // Predicated region
    $region37: #{tpu_custom_call.1} parent=5 // pred_check
      %p400 = pneg %p399
    $region38: #{tpu_custom_call.1} parent=5 // pred_check_branch
      %402 = sbr.rel (%p400) target = $region40
    $region39: #{tpu_custom_call.1} parent=5 // pred_region
      %s403 = ssub.s32 %s9, 2
      // Predicated region
      $region41: #{tpu_custom_call.1} parent=39 // pred_check
        %p404 = pneg %p106
      $region42: #{tpu_custom_call.1} parent=39 // pred_check_branch
        %406 = sbr.rel (%p404) target = $region44
      $region43: #{tpu_custom_call.1} parent=39 // pred_region
        %p407 = scmp.lt.s32.totalorder %s15, 1
        %s408 = scalar_select %p407, %s15, 1
        %s409 = smul.addr %s408, 8
        %s410 = scalar_lea.vmem %s3, %s409
      $region44: #{tpu_custom_call.1} parent=39 // pred_fallthru
        _
    $region40: #{tpu_custom_call.1} parent=5 // pred_fallthru
      _
  $region6: #{tpu_custom_call.1} parent=0 // loop_footer
    %s13 = sadd.s32 1, %s9
  $region7: #{tpu_custom_call.1} parent=0 // loop_footer_branch
    %8 = sbr.rel target = $region3
  $region8: #{tpu_custom_call.1} parent=0 // loop_exit
    _

</llo_original>
